<compile_context>
chip_gen: v7x
topology: tpu7x:2x2x1
jax: 0.10.0
libtpu: 0.0.40
codegen_flags: <defaults>
</compile_context>

<pallas_src>
import functools

import jax
import jax.numpy as jnp
from jax.experimental import pallas as pl
from jax.experimental.pallas import tpu as pltpu


def _round_up(x, m):
    return (x + m - 1) // m * m


# ---------------- Pass 1: conv-as-matmul + global BN statistics ----------------
def conv_stats_kernel(p_ref, w_ref, y_ref, stats_ref):
    # MXU: (TM, Kp) bf16  x  (Kp, Cp) bf16  -> f32 accumulate.
    y = jnp.dot(p_ref[...], w_ref[...], preferred_element_type=jnp.float32)
    y_ref[...] = y

    # stats_ref has a constant block index across the grid -> VMEM-resident
    # accumulator (grid axis marked "arbitrary").
    @pl.when(pl.program_id(0) == 0)
    def _():
        stats_ref[...] = jnp.zeros_like(stats_ref)

    s = jnp.sum(y, axis=0, keepdims=True)         # (1, Cp) per-channel sum
    ss = jnp.sum(y * y, axis=0, keepdims=True)    # (1, Cp) per-channel sum of squares
    stats_ref[...] += jnp.concatenate([s, ss], axis=0)


# ---------------- Pass 2: BatchNorm affine + PReLU ----------------
def bn_prelu_kernel(y_ref, scale_ref, shift_ref, alpha_ref, o_ref):
    y_bn = y_ref[...] * scale_ref[...] + shift_ref[...]
    o_ref[...] = jnp.where(y_bn >= 0.0, y_bn, alpha_ref[...] * y_bn)


@functools.partial(jax.jit, static_argnames=("kernel_size", "padding", "block_m"))
def conv_block_forward(x, weight, gamma, beta, alpha, *,
                       kernel_size=3, padding=1, block_m=1024, eps=1e-5):
    """x: (N, C_in, H, W) NCHW. weight: (C_out, C_in, k, k). Returns NCHW."""
    n, c_in, h, w = x.shape
    c_out = weight.shape[0]
    k = kernel_size

    # ---- XLA glue: NCHW -> NHWC, spatial pad, im2col with (kh, kw, c) order ----
    x_nhwc = jnp.transpose(x, (0, 2, 3, 1))
    xp = jnp.pad(x_nhwc, ((0, 0), (padding, padding), (padding, padding), (0, 0)))
    taps = [xp[:, kh:kh + h, kw:kw + w, :] for kh in range(k) for kw in range(k)]
    patches = jnp.stack(taps, axis=3).reshape(n * h * w, k * k * c_in)

    kd = k * k * c_in
    kp = _round_up(kd, 128)          # lane-dense contraction dim
    cp = _round_up(c_out, 128)       # lane-dense output channels
    m = n * h * w
    m_pad = _round_up(m, block_m)

    # Zero-pad rows (M) and contraction dim; zeros contribute nothing to the
    # matmul or the BN sums (we divide by the true M below).
    patches = jnp.pad(patches, ((0, m_pad - m), (0, kp - kd))).astype(jnp.bfloat16)

    # OIHW -> HWIO -> (Kd, Cout), zero-padded to (Kp, Cp).
    w_mat = jnp.transpose(weight, (2, 3, 1, 0)).reshape(kd, c_out)
    w_mat = jnp.pad(w_mat, ((0, kp - kd), (0, cp - c_out))).astype(jnp.bfloat16)

    grid = (m_pad // block_m,)

    conv_out, stats = pl.pallas_call(
        conv_stats_kernel,
        out_shape=(jax.ShapeDtypeStruct((m_pad, cp), jnp.float32),
                   jax.ShapeDtypeStruct((2, cp), jnp.float32)),
        grid_spec=pltpu.PrefetchScalarGridSpec(
            num_scalar_prefetch=0,
            grid=grid,
            in_specs=[
                pl.BlockSpec((block_m, kp), lambda i: (i, 0)),   # patches tile
                pl.BlockSpec((kp, cp), lambda i: (0, 0)),        # weights, DMA'd once
            ],
            out_specs=[
                pl.BlockSpec((block_m, cp), lambda i: (i, 0)),   # conv output tile
                pl.BlockSpec((2, cp), lambda i: (0, 0)),         # resident stats acc
            ],
        ),
        compiler_params=pltpu.CompilerParams(
            dimension_semantics=("arbitrary",),    # stats accumulator revisits its block
            vmem_limit_bytes=32 * 1024 * 1024),
    )(patches, w_mat)

    # ---- Tiny per-channel math (Cp values) in XLA: fold BN into scale/shift ----
    count = jnp.float32(m)                       # true row count (padded rows are 0)
    mean = stats[0] / count
    var = stats[1] / count - mean * mean         # biased variance (PyTorch training BN)
    gamma_p = jnp.pad(gamma.astype(jnp.float32), (0, cp - c_out))
    beta_p = jnp.pad(beta.astype(jnp.float32), (0, cp - c_out))
    alpha_p = jnp.pad(alpha.astype(jnp.float32), (0, cp - c_out))
    scale = gamma_p * jax.lax.rsqrt(var + eps)
    shift = beta_p - mean * scale

    out2d = pl.pallas_call(
        bn_prelu_kernel,
        out_shape=jax.ShapeDtypeStruct((m_pad, cp), jnp.float32),
        grid_spec=pltpu.PrefetchScalarGridSpec(
            num_scalar_prefetch=0,
            grid=grid,
            in_specs=[
                pl.BlockSpec((block_m, cp), lambda i: (i, 0)),   # conv output tile
                pl.BlockSpec((1, cp), lambda i: (0, 0)),         # scale (DMA'd once)
                pl.BlockSpec((1, cp), lambda i: (0, 0)),         # shift
                pl.BlockSpec((1, cp), lambda i: (0, 0)),         # PReLU alpha
            ],
            out_specs=pl.BlockSpec((block_m, cp), lambda i: (i, 0)),
        ),
        compiler_params=pltpu.CompilerParams(
            dimension_semantics=("parallel",),     # shard over TCs on v7x
            vmem_limit_bytes=32 * 1024 * 1024),
    )(conv_out, scale.reshape(1, cp), shift.reshape(1, cp), alpha_p.reshape(1, cp))

    # (M_pad, Cp) -> valid rows/channels -> (N, H, W, Cout) -> NCHW
    out = out2d[:m, :c_out].reshape(n, h, w, c_out)
    return jnp.transpose(out, (0, 3, 1, 2))


if __name__ == "__main__":
    # ConvBlock(in_channels=4, out_channels=8, kernel_size=3, stride=1, padding=1)
    # discriminator=False, use_activation=True, use_batchnorm=True -> conv bias=False
    key = jax.random.PRNGKey(0)
    k_x, k_w = jax.random.split(key)

    N, C_in, H, W = 2, 4, 16, 16
    C_out, K = 8, 3

    x = jax.random.normal(k_x, (N, C_in, H, W), dtype=jnp.float32)
    weight = jax.random.normal(k_w, (C_out, C_in, K, K), dtype=jnp.float32) * 0.1
    gamma = jnp.ones((C_out,), jnp.float32)          # BatchNorm2d weight init
    beta = jnp.zeros((C_out,), jnp.float32)          # BatchNorm2d bias init
    alpha = jnp.full((C_out,), 0.25, jnp.float32)    # PReLU(out_channels) init

    # block_m=128 at this toy size so the M grid has 4 steps (exercises the
    # cross-tile BN statistics accumulation). Use 512-2048 for real shapes.
    out = conv_block_forward(x, weight, gamma, beta, alpha,
                             kernel_size=K, padding=1, block_m=128)
    jax.block_until_ready(out)

    # Reference (pure JAX). Kernel matmul inputs are bf16, so round the
    # reference conv inputs to bf16 too (f32 accumulation) for apples-to-apples.
    xb = x.astype(jnp.bfloat16).astype(jnp.float32)
    wb = weight.astype(jnp.bfloat16).astype(jnp.float32)
    ref_conv = jax.lax.conv_general_dilated(
        xb, wb, window_strides=(1, 1), padding=((1, 1), (1, 1)),
        dimension_numbers=("NCHW", "OIHW", "NCHW"),
        precision=jax.lax.Precision.HIGHEST)
    mu = ref_conv.mean(axis=(0, 2, 3), keepdims=True)
    var = ref_conv.var(axis=(0, 2, 3), keepdims=True)
    ref_bn = (ref_conv - mu) * jax.lax.rsqrt(var + 1e-5)
    ref_bn = ref_bn * gamma.reshape(1, -1, 1, 1) + beta.reshape(1, -1, 1, 1)
    ref = jnp.where(ref_bn >= 0, ref_bn, alpha.reshape(1, -1, 1, 1) * ref_bn)

    assert out.shape == (N, C_out, H, W)
    assert jnp.allclose(out, ref, atol=1e-2, rtol=1e-2), (
        float(jnp.max(jnp.abs(out - ref))))
    print("KERNEL_OK")
</pallas_src>

<mosaic_0001>
module attributes {stable_mosaic.version = 11 : i64} {
  func.func @bn_prelu_kernel(%arg0: i32, %arg1: memref<128x128xf32, #tpu.memory_space<vmem>>, %arg2: memref<1x128xf32, #tpu.memory_space<vmem>>, %arg3: memref<1x128xf32, #tpu.memory_space<vmem>>, %arg4: memref<1x128xf32, #tpu.memory_space<vmem>>, %arg5: memref<128x128xf32, #tpu.memory_space<vmem>>) attributes {dimension_semantics = [#tpu.dimension_semantics<parallel>], iteration_bounds = array<i64: 4>, scalar_prefetch = 0 : i64, scratch_operands = 0 : i64, tpu.core_type = #tpu.core_type<tc>, window_params = [{transform_indices = @transform_0, window_bounds = array<i64: 128, 128>}, {pipeline_mode = #tpu.pipeline_mode<synchronous>, transform_indices = @transform_1, window_bounds = array<i64: 1, 128>}, {pipeline_mode = #tpu.pipeline_mode<synchronous>, transform_indices = @transform_2, window_bounds = array<i64: 1, 128>}, {pipeline_mode = #tpu.pipeline_mode<synchronous>, transform_indices = @transform_3, window_bounds = array<i64: 1, 128>}, {transform_indices = @transform_4, window_bounds = array<i64: 128, 128>}]} {
    %c0 = arith.constant 0 : index
    %c0_0 = arith.constant 0 : index
    %0 = vector.load %arg1[%c0, %c0_0] : memref<128x128xf32, #tpu.memory_space<vmem>>, vector<128x128xf32>
    %c0_1 = arith.constant 0 : index
    %c0_2 = arith.constant 0 : index
    %1 = vector.load %arg2[%c0_1, %c0_2] : memref<1x128xf32, #tpu.memory_space<vmem>>, vector<1x128xf32>
    %2 = vector.broadcast %1 : vector<1x128xf32> to vector<128x128xf32>
    %3 = arith.mulf %0, %2 : vector<128x128xf32>
    %c0_3 = arith.constant 0 : index
    %c0_4 = arith.constant 0 : index
    %4 = vector.load %arg3[%c0_3, %c0_4] : memref<1x128xf32, #tpu.memory_space<vmem>>, vector<1x128xf32>
    %5 = vector.broadcast %4 : vector<1x128xf32> to vector<128x128xf32>
    %6 = arith.addf %3, %5 : vector<128x128xf32>
    %cst = arith.constant 0.000000e+00 : f32
    %7 = vector.broadcast %cst : f32 to vector<128x128xf32>
    %8 = arith.cmpf oge, %6, %7 : vector<128x128xf32>
    %c0_5 = arith.constant 0 : index
    %c0_6 = arith.constant 0 : index
    %9 = vector.load %arg4[%c0_5, %c0_6] : memref<1x128xf32, #tpu.memory_space<vmem>>, vector<1x128xf32>
    %10 = vector.broadcast %9 : vector<1x128xf32> to vector<128x128xf32>
    %11 = arith.mulf %10, %6 : vector<128x128xf32>
    %12 = arith.select %8, %6, %11 : vector<128x128xi1>, vector<128x128xf32>
    %c0_7 = arith.constant 0 : index
    %c0_8 = arith.constant 0 : index
    %13 = vector.load %arg5[%c0_7, %c0_8] : memref<128x128xf32, #tpu.memory_space<vmem>>, vector<128x128xf32>
    tpu.vector_store %arg5[%c0_7, %c0_8], %12 {strides = array<i32>} : memref<128x128xf32, #tpu.memory_space<vmem>>, vector<128x128xf32>,
    return
  }
  func.func @transform_0(%arg0: i32) -> (i32, i32) {
    %c0_i32 = arith.constant 0 : i32
    %c0_i32_0 = arith.constant 0 : i32
    return %arg0, %c0_i32 : i32, i32
  }
  func.func @transform_1(%arg0: i32) -> (i32, i32) {
    %c0_i32 = arith.constant 0 : i32
    %c0_i32_0 = arith.constant 0 : i32
    %c0_i32_1 = arith.constant 0 : i32
    return %c0_i32, %c0_i32_0 : i32, i32
  }
  func.func @transform_2(%arg0: i32) -> (i32, i32) {
    %c0_i32 = arith.constant 0 : i32
    %c0_i32_0 = arith.constant 0 : i32
    %c0_i32_1 = arith.constant 0 : i32
    return %c0_i32, %c0_i32_0 : i32, i32
  }
  func.func @transform_3(%arg0: i32) -> (i32, i32) {
    %c0_i32 = arith.constant 0 : i32
    %c0_i32_0 = arith.constant 0 : i32
    %c0_i32_1 = arith.constant 0 : i32
    return %c0_i32, %c0_i32_0 : i32, i32
  }
  func.func @transform_4(%arg0: i32) -> (i32, i32) {
    %c0_i32 = arith.constant 0 : i32
    %c0_i32_0 = arith.constant 0 : i32
    return %arg0, %c0_i32 : i32, i32
  }
}

module attributes {stable_mosaic.version = 11 : i64} {
  func.func @conv_stats_kernel(%arg0: i32, %arg1: memref<128x128xbf16, #tpu.memory_space<vmem>>, %arg2: memref<128x128xbf16, #tpu.memory_space<vmem>>, %arg3: memref<128x128xf32, #tpu.memory_space<vmem>>, %arg4: memref<2x128xf32, #tpu.memory_space<vmem>>) attributes {dimension_semantics = [#tpu.dimension_semantics<arbitrary>], iteration_bounds = array<i64: 4>, scalar_prefetch = 0 : i64, scratch_operands = 0 : i64, tpu.core_type = #tpu.core_type<tc>, window_params = [{transform_indices = @transform_0, window_bounds = array<i64: 128, 128>}, {pipeline_mode = #tpu.pipeline_mode<synchronous>, transform_indices = @transform_1, window_bounds = array<i64: 128, 128>}, {transform_indices = @transform_2, window_bounds = array<i64: 128, 128>}, {pipeline_mode = #tpu.pipeline_mode<synchronous>, transform_indices = @transform_3, window_bounds = array<i64: 2, 128>}]} {
    %c0 = arith.constant 0 : index
    %c0_0 = arith.constant 0 : index
    %0 = vector.load %arg1[%c0, %c0_0] : memref<128x128xbf16, #tpu.memory_space<vmem>>, vector<128x128xbf16>
    %c0_1 = arith.constant 0 : index
    %c0_2 = arith.constant 0 : index
    %1 = vector.load %arg2[%c0_1, %c0_2] : memref<128x128xbf16, #tpu.memory_space<vmem>>, vector<128x128xbf16>
    %cst = arith.constant dense<0.000000e+00> : vector<128x128xf32>
    %2 = tpu.matmul %0, %1, %cst {dimension_numbers = #tpu.dot_dimension_numbers<[1], [0], [0], [1], [0, 0, 1, 1], [], []>} : vector<128x128xbf16>, vector<128x128xbf16>, vector<128x128xf32> -> vector<128x128xf32>
    %c0_3 = arith.constant 0 : index
    %c0_4 = arith.constant 0 : index
    %3 = vector.load %arg3[%c0_3, %c0_4] : memref<128x128xf32, #tpu.memory_space<vmem>>, vector<128x128xf32>
    tpu.vector_store %arg3[%c0_3, %c0_4], %2 {strides = array<i32>} : memref<128x128xf32, #tpu.memory_space<vmem>>, vector<128x128xf32>,
    %c0_i32 = arith.constant 0 : i32
    %4 = arith.cmpi eq, %arg0, %c0_i32 : i32
    %5 = arith.extui %4 : i1 to i32
    %c0_i32_5 = arith.constant 0 : i32
    %6 = arith.cmpi ne, %5, %c0_i32_5 : i32
    scf.if %6 {
      %cst_12 = arith.constant 0.000000e+00 : f32
      %16 = vector.broadcast %cst_12 : f32 to vector<2x128xf32>
      %c0_13 = arith.constant 0 : index
      %c0_14 = arith.constant 0 : index
      %17 = vector.load %arg4[%c0_13, %c0_14] : memref<2x128xf32, #tpu.memory_space<vmem>>, vector<2x128xf32>
      tpu.vector_store %arg4[%c0_13, %c0_14], %16 {strides = array<i32>} : memref<2x128xf32, #tpu.memory_space<vmem>>, vector<2x128xf32>,
    } else {
    }
    %cst_6 = arith.constant dense<0.000000e+00> : vector<128xf32>
    %7 = vector.multi_reduction <add>, %2, %cst_6 [0] : vector<128x128xf32> to vector<128xf32>
    %8 = vector.shape_cast %7 : vector<128xf32> to vector<1x128xf32>
    %9 = arith.mulf %2, %2 : vector<128x128xf32>
    %cst_7 = arith.constant dense<0.000000e+00> : vector<128xf32>
    %10 = vector.multi_reduction <add>, %9, %cst_7 [0] : vector<128x128xf32> to vector<128xf32>
    %11 = vector.shape_cast %10 : vector<128xf32> to vector<1x128xf32>
    %c0_8 = arith.constant 0 : index
    %c0_9 = arith.constant 0 : index
    %12 = vector.load %arg4[%c0_8, %c0_9] : memref<2x128xf32, #tpu.memory_space<vmem>>, vector<2x128xf32>
    %13 = tpu.concatenate %8, %11 in 0 : vector<1x128xf32>, vector<1x128xf32> -> vector<2x128xf32>
    %14 = arith.addf %12, %13 : vector<2x128xf32>
    %c0_10 = arith.constant 0 : index
    %c0_11 = arith.constant 0 : index
    %15 = vector.load %arg4[%c0_10, %c0_11] : memref<2x128xf32, #tpu.memory_space<vmem>>, vector<2x128xf32>
    tpu.vector_store %arg4[%c0_10, %c0_11], %14 {strides = array<i32>} : memref<2x128xf32, #tpu.memory_space<vmem>>, vector<2x128xf32>,
    return
  }
  func.func @transform_0(%arg0: i32) -> (i32, i32) {
    %c0_i32 = arith.constant 0 : i32
    %c0_i32_0 = arith.constant 0 : i32
    return %arg0, %c0_i32 : i32, i32
  }
  func.func @transform_1(%arg0: i32) -> (i32, i32) {
    %c0_i32 = arith.constant 0 : i32
    %c0_i32_0 = arith.constant 0 : i32
    %c0_i32_1 = arith.constant 0 : i32
    return %c0_i32, %c0_i32_0 : i32, i32
  }
  func.func @transform_2(%arg0: i32) -> (i32, i32) {
    %c0_i32 = arith.constant 0 : i32
    %c0_i32_0 = arith.constant 0 : i32
    return %arg0, %c0_i32 : i32, i32
  }
  func.func @transform_3(%arg0: i32) -> (i32, i32) {
    %c0_i32 = arith.constant 0 : i32
    %c0_i32_0 = arith.constant 0 : i32
    %c0_i32_1 = arith.constant 0 : i32
    return %c0_i32, %c0_i32_0 : i32, i32
  }
}

</mosaic_0001>

<llo_original>
// kernel: conv_block_forward.3
$region0: #{conv_block_forward.3}
  #allocation0 [shape = 'u32[]', space=smem, size = 0x4, offset = 0x4, fixed_abs, tag = 'smem constant byte address 0x4 - core index']
  #allocation1 [shape = 'u32[144,128]{1,0:T(1,128)}', space=vmem, size = 0x12000, scoped, tag = 'internal scratch']
  %s0 = inlined_call_operand.vmem [shape: f32[512,128], index: 0, kind: input, shape index: {}]
  %s1 = inlined_call_operand.vmem [shape: f32[1,128], index: 1, kind: input, shape index: {}]
  %s2 = inlined_call_operand.vmem [shape: f32[1,128], index: 2, kind: input, shape index: {}]
  %s3 = inlined_call_operand.vmem [shape: f32[1,128], index: 3, kind: input, shape index: {}]
  %s4 = inlined_call_operand.vmem [shape: f32[512,128], index: 4, kind: output, shape index: {}]
  %s5 = sld [smem:[#allocation0]]
  $region49: #{conv_block_forward.3} parent=0
    _
  %s7 = ssub.s32 1, %s5
  %s8 = scalar_select 0, %s7, %s5
  loop: start=0, step=1, limit=6
  $region2: #{conv_block_forward.3} parent=0 // loop_pre_header
    _
  $region3: #{conv_block_forward.3} parent=0 // loop_header
    %s10 = sphi 0, %s14
    %p11 = scmp.ge.s32.totalorder %s10, 6
    %s20 = sphi 0, %s22
    %s23 = sphi 0, %s20
    %s24 = sphi 0, %s23
    %s40 = sphi 0, %s24
    %s44 = sphi 0, %s44
    %s46 = sphi 0, %s44
    %s47 = sphi 0, %s46
    %s61 = sphi 0, %s47
    %s65 = sphi 0, %s65
    %s67 = sphi 0, %s65
    %s68 = sphi 0, %s67
    %s82 = sphi 0, %s68
    %s86 = sphi 0, %s86
    %s88 = sphi 0, %s86
    %s89 = sphi 0, %s88
    %s103 = sphi 0, %s89
    %s109 = sphi 0, %s111
    %s112 = sphi 0, %s109
    %s113 = sphi 0, %s112
    %s129 = sphi 0, %s113
  $region4: #{conv_block_forward.3} parent=0 // loop_header_branch
    %13 = sbr.rel (%p11) target = $region8
  $region5: #{conv_block_forward.3} parent=0 // loop_body
    %s15 = ssub.s32 %s10, 1
    %s16 = ssub.s32 %s10, 2
    %s17 = sadd.s32 %s10, 1
    %s18 = ssub.s32 %s10, %s17
    %p19 = scmp.eq.s32.totalorder %s18, 0
    %s21 = sadd.s32 %s20, 1
    %s22 = scalar_select %p19, %s20, %s21
    %p25 = pneg %p19
    %p26 = scmp.eq.s32.totalorder %s10, 3
    %p27 = por %p25, %p26
    %p28 = scmp.ne.s32.totalorder %s20, %s23
    %p29 = scmp.eq.s32.totalorder %s10, 0
    %p30 = por %p28, %p29
    %p31 = scmp.ne.s32.totalorder %s20, %s23
    %p32 = scmp.eq.s32.totalorder %s15, 3
    %p33 = por %p31, %p32
    %p34 = scmp.ne.s32.totalorder %s23, %s24
    %p35 = scmp.eq.s32.totalorder %s15, 0
    %p36 = por %p34, %p35
    %p37 = scmp.ne.s32.totalorder %s23, %s24
    %p38 = scmp.eq.s32.totalorder %s16, 3
    %p39 = por %p37, %p38
    %p41 = scmp.ne.s32.totalorder %s24, %s40
    %p42 = scmp.eq.s32.totalorder %s16, 0
    %p43 = por %p41, %p42
    %s45 = sadd.s32 %s44, 1
    %p48 = scmp.eq.s32.totalorder %s10, 3
    %p49 = scmp.ne.s32.totalorder %s44, %s46
    %p50 = scmp.eq.s32.totalorder %s10, 0
    %p51 = por %p49, %p50
    %p52 = scmp.ne.s32.totalorder %s44, %s46
    %p53 = scmp.eq.s32.totalorder %s15, 3
    %p54 = por %p52, %p53
    %p55 = scmp.ne.s32.totalorder %s46, %s47
    %p56 = scmp.eq.s32.totalorder %s15, 0
    %p57 = por %p55, %p56
    %p58 = scmp.ne.s32.totalorder %s46, %s47
    %p59 = scmp.eq.s32.totalorder %s16, 3
    %p60 = por %p58, %p59
    %p62 = scmp.ne.s32.totalorder %s47, %s61
    %p63 = scmp.eq.s32.totalorder %s16, 0
    %p64 = por %p62, %p63
    %s66 = sadd.s32 %s65, 1
    %p69 = scmp.eq.s32.totalorder %s10, 3
    %p70 = scmp.ne.s32.totalorder %s65, %s67
    %p71 = scmp.eq.s32.totalorder %s10, 0
    %p72 = por %p70, %p71
    %p73 = scmp.ne.s32.totalorder %s65, %s67
    %p74 = scmp.eq.s32.totalorder %s15, 3
    %p75 = por %p73, %p74
    %p76 = scmp.ne.s32.totalorder %s67, %s68
    %p77 = scmp.eq.s32.totalorder %s15, 0
    %p78 = por %p76, %p77
    %p79 = scmp.ne.s32.totalorder %s67, %s68
    %p80 = scmp.eq.s32.totalorder %s16, 3
    %p81 = por %p79, %p80
    %p83 = scmp.ne.s32.totalorder %s68, %s82
    %p84 = scmp.eq.s32.totalorder %s16, 0
    %p85 = por %p83, %p84
    %s87 = sadd.s32 %s86, 1
    %p90 = scmp.eq.s32.totalorder %s10, 3
    %p91 = scmp.ne.s32.totalorder %s86, %s88
    %p92 = scmp.eq.s32.totalorder %s10, 0
    %p93 = por %p91, %p92
    %p94 = scmp.ne.s32.totalorder %s86, %s88
    %p95 = scmp.eq.s32.totalorder %s15, 3
    %p96 = por %p94, %p95
    %p97 = scmp.ne.s32.totalorder %s88, %s89
    %p98 = scmp.eq.s32.totalorder %s15, 0
    %p99 = por %p97, %p98
    %p100 = scmp.ne.s32.totalorder %s88, %s89
    %p101 = scmp.eq.s32.totalorder %s16, 3
    %p102 = por %p100, %p101
    %p104 = scmp.ne.s32.totalorder %s89, %s103
    %p105 = scmp.eq.s32.totalorder %s16, 0
    %p106 = por %p104, %p105
    %s107 = ssub.s32 %s10, %s17
    %p108 = scmp.eq.s32.totalorder %s107, 0
    %s110 = sadd.s32 %s109, 1
    %s111 = scalar_select %p108, %s109, %s110
    %p114 = pneg %p108
    %p115 = scmp.eq.s32.totalorder %s10, 3
    %p116 = por %p114, %p115
    %p117 = scmp.ne.s32.totalorder %s109, %s112
    %p118 = scmp.eq.s32.totalorder %s10, 0
    %p119 = por %p117, %p118
    %p120 = scmp.ne.s32.totalorder %s109, %s112
    %p121 = scmp.eq.s32.totalorder %s15, 3
    %p122 = por %p120, %p121
    %p123 = scmp.ne.s32.totalorder %s112, %s113
    %p124 = scmp.eq.s32.totalorder %s15, 0
    %p125 = por %p123, %p124
    %p126 = scmp.ne.s32.totalorder %s112, %s113
    %p127 = scmp.eq.s32.totalorder %s16, 3
    %p128 = por %p126, %p127
    %p130 = scmp.ne.s32.totalorder %s113, %s129
    %p131 = scmp.eq.s32.totalorder %s16, 0
    %p132 = por %p130, %p131
    %p133 = scmp.le.s32.totalorder 1, %s10
    %p134 = scmp.lt.s32.totalorder %s10, 5
    %p135 = pnand %p133, %p134
    %p136 = pneg %p135
    // Predicated region
    $region9: #{conv_block_forward.3} parent=5 // pred_check
      _
    $region10: #{conv_block_forward.3} parent=5 // pred_check_branch
      %138 = sbr.rel (%p135) target = $region12
    $region11: #{conv_block_forward.3} parent=5 // pred_region
      %s139 = ssub.s32 %s10, 1
      // Predicated region
      $region13: #{conv_block_forward.3} parent=11 // pred_check
        %p140 = pneg %p57
      $region14: #{conv_block_forward.3} parent=11 // pred_check_branch
        %142 = sbr.rel (%p140) target = $region16
      $region15: #{conv_block_forward.3} parent=11 // pred_region
        _
      $region16: #{conv_block_forward.3} parent=11 // pred_fallthru
        _
      // Predicated region
      $region17: #{conv_block_forward.3} parent=11 // pred_check
        %p143 = pneg %p78
      $region18: #{conv_block_forward.3} parent=11 // pred_check_branch
        %145 = sbr.rel (%p143) target = $region20
      $region19: #{conv_block_forward.3} parent=11 // pred_region
        _
      $region20: #{conv_block_forward.3} parent=11 // pred_fallthru
        _
      // Predicated region
      $region21: #{conv_block_forward.3} parent=11 // pred_check
        %p146 = pneg %p99
      $region22: #{conv_block_forward.3} parent=11 // pred_check_branch
        %148 = sbr.rel (%p146) target = $region24
      $region23: #{conv_block_forward.3} parent=11 // pred_region
        _
      $region24: #{conv_block_forward.3} parent=11 // pred_fallthru
        _
    $region12: #{conv_block_forward.3} parent=5 // pred_fallthru
      _
    %p149 = scmp.lt.s32.totalorder %s10, 4
    // Predicated region
    $region25: #{conv_block_forward.3} parent=5 // pred_check
      %p150 = pneg %p149
    $region26: #{conv_block_forward.3} parent=5 // pred_check_branch
      %152 = sbr.rel (%p150) target = $region28
    $region27: #{conv_block_forward.3} parent=5 // pred_region
      // Predicated region
      $region29: #{conv_block_forward.3} parent=27 // pred_check
        %p153 = pneg %p30
      $region30: #{conv_block_forward.3} parent=27 // pred_check_branch
        %155 = sbr.rel (%p153) target = $region32
      $region31: #{conv_block_forward.3} parent=27 // pred_region
        %s156 = smul.u32 16, %s10
        %p157 = scmp.lt.s32.totalorder %s156, 63
        %s158 = scalar_select %p157, %s156, 63
        %s159 = smul.addr %s158, 8
        %s160 = scalar_lea.vmem %s0, %s159
        %s161 = smul.u32 16, %s10
      $region32: #{conv_block_forward.3} parent=27 // pred_fallthru
        _
    $region28: #{conv_block_forward.3} parent=5 // pred_fallthru
      _
    %p162 = scmp.le.s32.totalorder 1, %s10
    %p163 = scmp.lt.s32.totalorder %s10, 5
    %p164 = pnand %p162, %p163
    %p165 = pneg %p164
    // Predicated region
    $region33: #{conv_block_forward.3} parent=5 // pred_check
      _
    $region34: #{conv_block_forward.3} parent=5 // pred_check_branch
      %167 = sbr.rel (%p164) target = $region36
    $region35: #{conv_block_forward.3} parent=5 // pred_region
      %s168 = ssub.s32 %s10, 1
      %s169 = smul.u32 16, %s15
      %p170 = scmp.lt.s32.totalorder %s169, 63
      %s171 = scalar_select %p170, %s169, 63
      %s172 = smul.addr %s171, 8
      %s173 = scalar_lea.vmem %s0, %s172
      %p174 = pneg %p36
      %p175 = pneg %p33
      %p176 = pneg %p57
      %p177 = pneg %p54
      %p178 = pneg %p78
      %p179 = pneg %p75
      %p180 = pneg %p99
      %p181 = pneg %p96
      %p182 = pneg %p125
      %p183 = pneg %p122
      %s184 = smul.u32 16, %s15
      %p185 = scmp.lt.s32.totalorder %s184, 63
      %s186 = scalar_select %p185, %s184, 63
      %s187 = smul.addr %s186, 8
      %s188 = scalar_lea.vmem %s4, %s187
      %s189 = smul.u32 16, %s15
      %p190 = scmp.lt.s32.totalorder %s189, 63
      %s191 = scalar_select %p190, %s189, 63
      %s192 = smul.addr %s191, 8
      %s193 = scalar_lea.vmem %s0, %s192
      %s194 = smul.u32 16, %s15
      %s195 = smul.u32 16, %s15
      %p196 = scmp.lt.s32.totalorder %s195, 63
      %s197 = scalar_select %p196, %s195, 63
      %s198 = smul.addr %s197, 8
      %s199 = scalar_lea.vmem %s4, %s198
      %s200 = smul.u32 16, %s15
      %v201 = vld [vmem:[%s193] sm:$0xff]
      %v202 = vld [vmem:[%s193 + $0x8] sm:$0xff]
      %v203 = vld [vmem:[%s193 + $0x10] sm:$0xff]
      %v204 = vld [vmem:[%s193 + $0x18] sm:$0xff]
      %v205 = vld [vmem:[%s193 + $0x20] sm:$0xff]
      %v206 = vld [vmem:[%s193 + $0x28] sm:$0xff]
      %v207 = vld [vmem:[%s193 + $0x30] sm:$0xff]
      %v208 = vld [vmem:[%s193 + $0x38] sm:$0xff]
      %v209 = vld [vmem:[%s193 + $0x40] sm:$0xff]
      %v210 = vld [vmem:[%s193 + $0x48] sm:$0xff]
      %v211 = vld [vmem:[%s193 + $0x50] sm:$0xff]
      %v212 = vld [vmem:[%s193 + $0x58] sm:$0xff]
      %v213 = vld [vmem:[%s193 + $0x60] sm:$0xff]
      %v214 = vld [vmem:[%s193 + $0x68] sm:$0xff]
      %v215 = vld [vmem:[%s193 + $0x70] sm:$0xff]
      %v216 = vld [vmem:[%s193 + $0x78] sm:$0xff]
      %v217 = vld [vmem:[%s1] sm:$0x1]
      %v219 = vlaneseq
      %v220 = vshrl.u32 %v219, 7
      %v221 = vsub.s32 0, %v220
      %v222 = vrot.slane %v217, %v221
      %v224 = vmul.f32 %v201, %v222
      %v225 = vmul.f32 %v202, %v222
      %v226 = vmul.f32 %v203, %v222
      %v227 = vmul.f32 %v204, %v222
      %v228 = vmul.f32 %v205, %v222
      %v229 = vmul.f32 %v206, %v222
      %v230 = vmul.f32 %v207, %v222
      %v231 = vmul.f32 %v208, %v222
      %v232 = vmul.f32 %v209, %v222
      %v233 = vmul.f32 %v210, %v222
      %v234 = vmul.f32 %v211, %v222
      %v235 = vmul.f32 %v212, %v222
      %v236 = vmul.f32 %v213, %v222
      %v237 = vmul.f32 %v214, %v222
      %v238 = vmul.f32 %v215, %v222
      %v239 = vmul.f32 %v216, %v222
      %v240 = vld [vmem:[%s2] sm:$0x1]
      %v242 = vlaneseq
      %v243 = vshrl.u32 %v242, 7
      %v244 = vsub.s32 0, %v243
      %v245 = vrot.slane %v240, %v244
      %v247 = vadd.f32 %v224, %v245
      %v248 = vadd.f32 %v225, %v245
      %v249 = vadd.f32 %v226, %v245
      %v250 = vadd.f32 %v227, %v245
      %v251 = vadd.f32 %v228, %v245
      %v252 = vadd.f32 %v229, %v245
      %v253 = vadd.f32 %v230, %v245
      %v254 = vadd.f32 %v231, %v245
      %v255 = vadd.f32 %v232, %v245
      %v256 = vadd.f32 %v233, %v245
      %v257 = vadd.f32 %v234, %v245
      %v258 = vadd.f32 %v235, %v245
      %v259 = vadd.f32 %v236, %v245
      %v260 = vadd.f32 %v237, %v245
      %v261 = vadd.f32 %v238, %v245
      %v262 = vadd.f32 %v239, %v245
      %vm263 = vcmp.ge.f32.partialorder %v247, 0.0
      %vm264 = vcmp.ge.f32.partialorder %v248, 0.0
      %vm265 = vcmp.ge.f32.partialorder %v249, 0.0
      %vm266 = vcmp.ge.f32.partialorder %v250, 0.0
      %vm267 = vcmp.ge.f32.partialorder %v251, 0.0
      %vm268 = vcmp.ge.f32.partialorder %v252, 0.0
      %vm269 = vcmp.ge.f32.partialorder %v253, 0.0
      %vm270 = vcmp.ge.f32.partialorder %v254, 0.0
      %vm271 = vcmp.ge.f32.partialorder %v255, 0.0
      %vm272 = vcmp.ge.f32.partialorder %v256, 0.0
      %vm273 = vcmp.ge.f32.partialorder %v257, 0.0
      %vm274 = vcmp.ge.f32.partialorder %v258, 0.0
      %vm275 = vcmp.ge.f32.partialorder %v259, 0.0
      %vm276 = vcmp.ge.f32.partialorder %v260, 0.0
      %vm277 = vcmp.ge.f32.partialorder %v261, 0.0
      %vm278 = vcmp.ge.f32.partialorder %v262, 0.0
      %v279 = vld [vmem:[%s3] sm:$0x1]
      %v281 = vlaneseq
      %v282 = vshrl.u32 %v281, 7
      %v283 = vsub.s32 0, %v282
      %v284 = vrot.slane %v279, %v283
      %v286 = vmul.f32 %v284, %v247
      %v287 = vmul.f32 %v284, %v248
      %v288 = vmul.f32 %v284, %v249
      %v289 = vmul.f32 %v284, %v250
      %v290 = vmul.f32 %v284, %v251
      %v291 = vmul.f32 %v284, %v252
      %v292 = vmul.f32 %v284, %v253
      %v293 = vmul.f32 %v284, %v254
      %v294 = vmul.f32 %v284, %v255
      %v295 = vmul.f32 %v284, %v256
      %v296 = vmul.f32 %v284, %v257
      %v297 = vmul.f32 %v284, %v258
      %v298 = vmul.f32 %v284, %v259
      %v299 = vmul.f32 %v284, %v260
      %v300 = vmul.f32 %v284, %v261
      %v301 = vmul.f32 %v284, %v262
      %v302 = vsel %vm263, %v247, %v286
      %v303 = vsel %vm264, %v248, %v287
      %v304 = vsel %vm265, %v249, %v288
      %v305 = vsel %vm266, %v250, %v289
      %v306 = vsel %vm267, %v251, %v290
      %v307 = vsel %vm268, %v252, %v291
      %v308 = vsel %vm269, %v253, %v292
      %v309 = vsel %vm270, %v254, %v293
      %v310 = vsel %vm271, %v255, %v294
      %v311 = vsel %vm272, %v256, %v295
      %v312 = vsel %vm273, %v257, %v296
      %v313 = vsel %vm274, %v258, %v297
      %v314 = vsel %vm275, %v259, %v298
      %v315 = vsel %vm276, %v260, %v299
      %v316 = vsel %vm277, %v261, %v300
      %v317 = vsel %vm278, %v262, %v301
      %318 = vst [vmem:[%s199] sm:$0xff] %v302
      %319 = vst [vmem:[%s199 + $0x8] sm:$0xff] %v303
      %320 = vst [vmem:[%s199 + $0x10] sm:$0xff] %v304
      %321 = vst [vmem:[%s199 + $0x18] sm:$0xff] %v305
      %322 = vst [vmem:[%s199 + $0x20] sm:$0xff] %v306
      %323 = vst [vmem:[%s199 + $0x28] sm:$0xff] %v307
      %324 = vst [vmem:[%s199 + $0x30] sm:$0xff] %v308
      %325 = vst [vmem:[%s199 + $0x38] sm:$0xff] %v309
      %326 = vst [vmem:[%s199 + $0x40] sm:$0xff] %v310
      %327 = vst [vmem:[%s199 + $0x48] sm:$0xff] %v311
      %328 = vst [vmem:[%s199 + $0x50] sm:$0xff] %v312
      %329 = vst [vmem:[%s199 + $0x58] sm:$0xff] %v313
      %330 = vst [vmem:[%s199 + $0x60] sm:$0xff] %v314
      %331 = vst [vmem:[%s199 + $0x68] sm:$0xff] %v315
      %332 = vst [vmem:[%s199 + $0x70] sm:$0xff] %v316
      %333 = vst [vmem:[%s199 + $0x78] sm:$0xff] %v317
      %s334 = smul.u32 16, %s15
      %p335 = scmp.lt.s32.totalorder %s334, 63
      %s336 = scalar_select %p335, %s334, 63
      %s337 = smul.addr %s336, 8
      %s338 = scalar_lea.vmem %s4, %s337
      // Predicated region
      $region37: #{conv_block_forward.3} parent=35 // pred_check
        %p339 = pneg %p122
      $region38: #{conv_block_forward.3} parent=35 // pred_check_branch
        %341 = sbr.rel (%p339) target = $region40
      $region39: #{conv_block_forward.3} parent=35 // pred_region
        %s342 = smul.u32 16, %s15
      $region40: #{conv_block_forward.3} parent=35 // pred_fallthru
        _
    $region36: #{conv_block_forward.3} parent=5 // pred_fallthru
      _
    %p343 = scmp.le.s32.totalorder 2, %s10
    // Predicated region
    $region41: #{conv_block_forward.3} parent=5 // pred_check
      %p344 = pneg %p343
    $region42: #{conv_block_forward.3} parent=5 // pred_check_branch
      %346 = sbr.rel (%p344) target = $region44
    $region43: #{conv_block_forward.3} parent=5 // pred_region
      %s347 = ssub.s32 %s10, 2
      // Predicated region
      $region45: #{conv_block_forward.3} parent=43 // pred_check
        %p348 = pneg %p128
      $region46: #{conv_block_forward.3} parent=43 // pred_check_branch
        %350 = sbr.rel (%p348) target = $region48
      $region47: #{conv_block_forward.3} parent=43 // pred_region
        %s351 = smul.u32 16, %s16
        %p352 = scmp.lt.s32.totalorder %s351, 63
        %s353 = scalar_select %p352, %s351, 63
        %s354 = smul.addr %s353, 8
        %s355 = scalar_lea.vmem %s4, %s354
      $region48: #{conv_block_forward.3} parent=43 // pred_fallthru
        _
    $region44: #{conv_block_forward.3} parent=5 // pred_fallthru
      _
  $region6: #{conv_block_forward.3} parent=0 // loop_footer
    %s14 = sadd.s32 1, %s10
  $region7: #{conv_block_forward.3} parent=0 // loop_footer_branch
    %9 = sbr.rel target = $region3
  $region8: #{conv_block_forward.3} parent=0 // loop_exit
    _

// kernel: conv_block_forward.2
$region0: #{conv_block_forward.2}
  #allocation0 [shape = 'u32[]', space=smem, size = 0x4, offset = 0x4, fixed_abs, tag = 'smem constant byte address 0x4 - core index']
  #allocation1 [shape = 'u32[144,128]{1,0:T(1,128)}', space=vmem, size = 0x12000, scoped, tag = 'internal scratch']
  %s0 = inlined_call_operand.vmem [shape: bf16[512,128], index: 0, kind: input, shape index: {}]
  %s1 = inlined_call_operand.vmem [shape: bf16[128,128], index: 1, kind: input, shape index: {}]
  %s2 = inlined_call_operand.vmem [shape: f32[512,128], index: 2, kind: output, shape index: {0}]
  %s3 = inlined_call_operand.vmem [shape: f32[2,128], index: 3, kind: output, shape index: {1}]
  %4 = xla_tuple %s2, %s3
  %s5 = sld [smem:[#allocation0]]
  $region53: #{conv_block_forward.2} parent=0
    _
  %s7 = ssub.s32 1, %s5
  %s8 = scalar_select 0, %s7, %s5
  loop: start=0, step=1, limit=6
  $region2: #{conv_block_forward.2} parent=0 // loop_pre_header
    _
  $region3: #{conv_block_forward.2} parent=0 // loop_header
    %s10 = sphi 0, %s14
    %p11 = scmp.ge.s32.totalorder %s10, 6
    %s20 = sphi 0, %s22
    %s23 = sphi 0, %s20
    %s24 = sphi 0, %s23
    %s40 = sphi 0, %s24
    %s44 = sphi 0, %s44
    %s46 = sphi 0, %s44
    %s47 = sphi 0, %s46
    %s61 = sphi 0, %s47
    %s67 = sphi 0, %s69
    %s70 = sphi 0, %s67
    %s71 = sphi 0, %s70
    %s87 = sphi 0, %s71
    %s91 = sphi 0, %s91
    %s93 = sphi 0, %s91
    %s94 = sphi 0, %s93
    %s108 = sphi 0, %s94
  $region4: #{conv_block_forward.2} parent=0 // loop_header_branch
    %13 = sbr.rel (%p11) target = $region8
  $region5: #{conv_block_forward.2} parent=0 // loop_body
    %s15 = ssub.s32 %s10, 1
    %s16 = ssub.s32 %s10, 2
    %s17 = sadd.s32 %s10, 1
    %s18 = ssub.s32 %s10, %s17
    %p19 = scmp.eq.s32.totalorder %s18, 0
    %s21 = sadd.s32 %s20, 1
    %s22 = scalar_select %p19, %s20, %s21
    %p25 = pneg %p19
    %p26 = scmp.eq.s32.totalorder %s10, 3
    %p27 = por %p25, %p26
    %p28 = scmp.ne.s32.totalorder %s20, %s23
    %p29 = scmp.eq.s32.totalorder %s10, 0
    %p30 = por %p28, %p29
    %p31 = scmp.ne.s32.totalorder %s20, %s23
    %p32 = scmp.eq.s32.totalorder %s15, 3
    %p33 = por %p31, %p32
    %p34 = scmp.ne.s32.totalorder %s23, %s24
    %p35 = scmp.eq.s32.totalorder %s15, 0
    %p36 = por %p34, %p35
    %p37 = scmp.ne.s32.totalorder %s23, %s24
    %p38 = scmp.eq.s32.totalorder %s16, 3
    %p39 = por %p37, %p38
    %p41 = scmp.ne.s32.totalorder %s24, %s40
    %p42 = scmp.eq.s32.totalorder %s16, 0
    %p43 = por %p41, %p42
    %s45 = sadd.s32 %s44, 1
    %p48 = scmp.eq.s32.totalorder %s10, 3
    %p49 = scmp.ne.s32.totalorder %s44, %s46
    %p50 = scmp.eq.s32.totalorder %s10, 0
    %p51 = por %p49, %p50
    %p52 = scmp.ne.s32.totalorder %s44, %s46
    %p53 = scmp.eq.s32.totalorder %s15, 3
    %p54 = por %p52, %p53
    %p55 = scmp.ne.s32.totalorder %s46, %s47
    %p56 = scmp.eq.s32.totalorder %s15, 0
    %p57 = por %p55, %p56
    %p58 = scmp.ne.s32.totalorder %s46, %s47
    %p59 = scmp.eq.s32.totalorder %s16, 3
    %p60 = por %p58, %p59
    %p62 = scmp.ne.s32.totalorder %s47, %s61
    %p63 = scmp.eq.s32.totalorder %s16, 0
    %p64 = por %p62, %p63
    %s65 = ssub.s32 %s10, %s17
    %p66 = scmp.eq.s32.totalorder %s65, 0
    %s68 = sadd.s32 %s67, 1
    %s69 = scalar_select %p66, %s67, %s68
    %p72 = pneg %p66
    %p73 = scmp.eq.s32.totalorder %s10, 3
    %p74 = por %p72, %p73
    %p75 = scmp.ne.s32.totalorder %s67, %s70
    %p76 = scmp.eq.s32.totalorder %s10, 0
    %p77 = por %p75, %p76
    %p78 = scmp.ne.s32.totalorder %s67, %s70
    %p79 = scmp.eq.s32.totalorder %s15, 3
    %p80 = por %p78, %p79
    %p81 = scmp.ne.s32.totalorder %s70, %s71
    %p82 = scmp.eq.s32.totalorder %s15, 0
    %p83 = por %p81, %p82
    %p84 = scmp.ne.s32.totalorder %s70, %s71
    %p85 = scmp.eq.s32.totalorder %s16, 3
    %p86 = por %p84, %p85
    %p88 = scmp.ne.s32.totalorder %s71, %s87
    %p89 = scmp.eq.s32.totalorder %s16, 0
    %p90 = por %p88, %p89
    %s92 = sadd.s32 %s91, 1
    %p95 = scmp.eq.s32.totalorder %s10, 3
    %p96 = scmp.ne.s32.totalorder %s91, %s93
    %p97 = scmp.eq.s32.totalorder %s10, 0
    %p98 = por %p96, %p97
    %p99 = scmp.ne.s32.totalorder %s91, %s93
    %p100 = scmp.eq.s32.totalorder %s15, 3
    %p101 = por %p99, %p100
    %p102 = scmp.ne.s32.totalorder %s93, %s94
    %p103 = scmp.eq.s32.totalorder %s15, 0
    %p104 = por %p102, %p103
    %p105 = scmp.ne.s32.totalorder %s93, %s94
    %p106 = scmp.eq.s32.totalorder %s16, 3
    %p107 = por %p105, %p106
    %p109 = scmp.ne.s32.totalorder %s94, %s108
    %p110 = scmp.eq.s32.totalorder %s16, 0
    %p111 = por %p109, %p110
    %p112 = scmp.le.s32.totalorder 1, %s10
    %p113 = scmp.lt.s32.totalorder %s10, 5
    %p114 = pnand %p112, %p113
    %p115 = pneg %p114
    // Predicated region
    $region9: #{conv_block_forward.2} parent=5 // pred_check
      _
    $region10: #{conv_block_forward.2} parent=5 // pred_check_branch
      %117 = sbr.rel (%p114) target = $region12
    $region11: #{conv_block_forward.2} parent=5 // pred_region
      %s118 = ssub.s32 %s10, 1
      // Predicated region
      $region13: #{conv_block_forward.2} parent=11 // pred_check
        %p119 = pneg %p57
      $region14: #{conv_block_forward.2} parent=11 // pred_check_branch
        %121 = sbr.rel (%p119) target = $region16
      $region15: #{conv_block_forward.2} parent=11 // pred_region
        _
      $region16: #{conv_block_forward.2} parent=11 // pred_fallthru
        _
    $region12: #{conv_block_forward.2} parent=5 // pred_fallthru
      _
    %p122 = scmp.lt.s32.totalorder %s10, 4
    // Predicated region
    $region17: #{conv_block_forward.2} parent=5 // pred_check
      %p123 = pneg %p122
    $region18: #{conv_block_forward.2} parent=5 // pred_check_branch
      %125 = sbr.rel (%p123) target = $region20
    $region19: #{conv_block_forward.2} parent=5 // pred_region
      // Predicated region
      $region21: #{conv_block_forward.2} parent=19 // pred_check
        %p126 = pneg %p30
      $region22: #{conv_block_forward.2} parent=19 // pred_check_branch
        %128 = sbr.rel (%p126) target = $region24
      $region23: #{conv_block_forward.2} parent=19 // pred_region
        %s129 = smul.u32 16, %s10
        %p130 = scmp.lt.s32.totalorder %s129, 63
        %s131 = scalar_select %p130, %s129, 63
        %s132 = smul.addr %s131, 4
        %s133 = scalar_lea.vmem %s0, %s132
        %s134 = smul.u32 16, %s10
      $region24: #{conv_block_forward.2} parent=19 // pred_fallthru
        _
    $region20: #{conv_block_forward.2} parent=5 // pred_fallthru
      _
    %p135 = scmp.le.s32.totalorder 1, %s10
    %p136 = scmp.lt.s32.totalorder %s10, 5
    %p137 = pnand %p135, %p136
    %p138 = pneg %p137
    // Predicated region
    $region25: #{conv_block_forward.2} parent=5 // pred_check
      _
    $region26: #{conv_block_forward.2} parent=5 // pred_check_branch
      %140 = sbr.rel (%p137) target = $region28
    $region27: #{conv_block_forward.2} parent=5 // pred_region
      %s141 = ssub.s32 %s10, 1
      %s142 = smul.u32 16, %s15
      %p143 = scmp.lt.s32.totalorder %s142, 63
      %s144 = scalar_select %p143, %s142, 63
      %s145 = smul.addr %s144, 4
      %s146 = scalar_lea.vmem %s0, %s145
      %p147 = pneg %p36
      %p148 = pneg %p33
      %p149 = pneg %p57
      %p150 = pneg %p54
      %p151 = pneg %p83
      %p152 = pneg %p80
      %s153 = smul.u32 16, %s15
      %p154 = scmp.lt.s32.totalorder %s153, 63
      %s155 = scalar_select %p154, %s153, 63
      %s156 = smul.addr %s155, 8
      %s157 = scalar_lea.vmem %s2, %s156
      %p158 = pneg %p104
      %p159 = pneg %p101
      %s160 = smul.u32 16, %s15
      %p161 = scmp.lt.s32.totalorder %s160, 63
      %s162 = scalar_select %p161, %s160, 63
      %s163 = smul.addr %s162, 4
      %s164 = scalar_lea.vmem %s0, %s163
      %s165 = smul.u32 16, %s15
      %s166 = smul.u32 16, %s15
      %p167 = scmp.lt.s32.totalorder %s166, 63
      %s168 = scalar_select %p167, %s166, 63
      %s169 = smul.addr %s168, 8
      %s170 = scalar_lea.vmem %s2, %s169
      %s171 = smul.u32 16, %s15
      %v173 = vld [vmem:[%s164] sm:$0xf]
      %v174 = vld [vmem:[%s164 + $0x4] sm:$0xf]
      %v175 = vld [vmem:[%s164 + $0x8] sm:$0xf]
      %v176 = vld [vmem:[%s164 + $0xc] sm:$0xf]
      %v177 = vld [vmem:[%s164 + $0x10] sm:$0xf]
      %v178 = vld [vmem:[%s164 + $0x14] sm:$0xf]
      %v179 = vld [vmem:[%s164 + $0x18] sm:$0xf]
      %v180 = vld [vmem:[%s164 + $0x1c] sm:$0xf]
      %v181 = vld [vmem:[%s164 + $0x20] sm:$0xf]
      %v182 = vld [vmem:[%s164 + $0x24] sm:$0xf]
      %v183 = vld [vmem:[%s164 + $0x28] sm:$0xf]
      %v184 = vld [vmem:[%s164 + $0x2c] sm:$0xf]
      %v185 = vld [vmem:[%s164 + $0x30] sm:$0xf]
      %v186 = vld [vmem:[%s164 + $0x34] sm:$0xf]
      %v187 = vld [vmem:[%s164 + $0x38] sm:$0xf]
      %v188 = vld [vmem:[%s164 + $0x3c] sm:$0xf]
      %v189 = vld [vmem:[%s1] sm:$0xf]
      %v190 = vld [vmem:[%s1 + $0x4] sm:$0xf]
      %v191 = vld [vmem:[%s1 + $0x8] sm:$0xf]
      %v192 = vld [vmem:[%s1 + $0xc] sm:$0xf]
      %v193 = vld [vmem:[%s1 + $0x10] sm:$0xf]
      %v194 = vld [vmem:[%s1 + $0x14] sm:$0xf]
      %v195 = vld [vmem:[%s1 + $0x18] sm:$0xf]
      %v196 = vld [vmem:[%s1 + $0x1c] sm:$0xf]
      %v197 = vld [vmem:[%s1 + $0x20] sm:$0xf]
      %v198 = vld [vmem:[%s1 + $0x24] sm:$0xf]
      %v199 = vld [vmem:[%s1 + $0x28] sm:$0xf]
      %v200 = vld [vmem:[%s1 + $0x2c] sm:$0xf]
      %v201 = vld [vmem:[%s1 + $0x30] sm:$0xf]
      %v202 = vld [vmem:[%s1 + $0x34] sm:$0xf]
      %v203 = vld [vmem:[%s1 + $0x38] sm:$0xf]
      %v204 = vld [vmem:[%s1 + $0x3c] sm:$0xf]
      %v221 = vunpack.c.l.b16 %v173
      %v222 = vunpack.c.l.b16 %v174
      %v223 = vunpack.c.l.b16 %v175
      %v224 = vunpack.c.l.b16 %v176
      %v225 = vunpack.c.l.b16 %v177
      %v226 = vunpack.c.l.b16 %v178
      %v227 = vunpack.c.l.b16 %v179
      %v228 = vunpack.c.l.b16 %v180
      %v229 = vunpack.c.l.b16 %v181
      %v230 = vunpack.c.l.b16 %v182
      %v231 = vunpack.c.l.b16 %v183
      %v232 = vunpack.c.l.b16 %v184
      %v233 = vunpack.c.l.b16 %v185
      %v234 = vunpack.c.l.b16 %v186
      %v235 = vunpack.c.l.b16 %v187
      %v236 = vunpack.c.l.b16 %v188
      %v237 = vpack.c.b16 %v222, %v221
      %v238 = vpack.c.b16 %v224, %v223
      %v239 = vpack.c.b16 %v226, %v225
      %v240 = vpack.c.b16 %v228, %v227
      %v241 = vpack.c.b16 %v230, %v229
      %v242 = vpack.c.b16 %v232, %v231
      %v243 = vpack.c.b16 %v234, %v233
      %v244 = vpack.c.b16 %v236, %v235
      %v269 = vunpack.c.l.b16 %v189
      %v270 = vunpack.c.l.b16 %v190
      %v271 = vunpack.c.l.b16 %v191
      %v272 = vunpack.c.l.b16 %v192
      %v273 = vunpack.c.l.b16 %v193
      %v274 = vunpack.c.l.b16 %v194
      %v275 = vunpack.c.l.b16 %v195
      %v276 = vunpack.c.l.b16 %v196
      %v277 = vunpack.c.l.b16 %v197
      %v278 = vunpack.c.l.b16 %v198
      %v279 = vunpack.c.l.b16 %v199
      %v280 = vunpack.c.l.b16 %v200
      %v281 = vunpack.c.l.b16 %v201
      %v282 = vunpack.c.l.b16 %v202
      %v283 = vunpack.c.l.b16 %v203
      %v284 = vunpack.c.l.b16 %v204
      %v285 = vpack.c.b16 %v270, %v269
      %v286 = vpack.c.b16 %v272, %v271
      %v287 = vpack.c.b16 %v274, %v273
      %v288 = vpack.c.b16 %v276, %v275
      %v289 = vpack.c.b16 %v278, %v277
      %v290 = vpack.c.b16 %v280, %v279
      %v291 = vpack.c.b16 %v282, %v281
      %v292 = vpack.c.b16 %v284, %v283
      %301 = vmatprep.subr.bf16.mxu0 0
      %302 = vmatpush1.bf16.msra.mxu0 %v285
      %303 = vmatprep.subr.bf16.mxu0 0
      %304 = vmatpush1.bf16.msra.mxu0 %v286
      %305 = vmatprep.subr.bf16.mxu0 0
      %306 = vmatpush1.bf16.msra.mxu0 %v287
      %307 = vmatprep.subr.bf16.mxu0 0
      %308 = vmatpush1.bf16.msra.mxu0 %v288
      %309 = vmatprep.subr.bf16.mxu0 0
      %310 = vmatpush1.bf16.msra.mxu0 %v289
      %311 = vmatprep.subr.bf16.mxu0 0
      %312 = vmatpush1.bf16.msra.mxu0 %v290
      %313 = vmatprep.subr.bf16.mxu0 0
      %314 = vmatpush1.bf16.msra.mxu0 %v291
      %315 = vmatprep.subr.bf16.mxu0 0
      %316 = vmatpush1.bf16.msra.mxu0 %v292
      %317 = vmatprep.subr.bf16.mxu0 0
      %318 = vmatpush1.bf16.msra.mxu0 0
      %319 = vmatprep.subr.bf16.mxu0 0
      %320 = vmatpush1.bf16.msra.mxu0 0
      %321 = vmatprep.subr.bf16.mxu0 0
      %322 = vmatpush1.bf16.msra.mxu0 0
      %323 = vmatprep.subr.bf16.mxu0 0
      %324 = vmatpush1.bf16.msra.mxu0 0
      %325 = vmatprep.subr.bf16.mxu0 0
      %326 = vmatpush1.bf16.msra.mxu0 0
      %327 = vmatprep.subr.bf16.mxu0 0
      %328 = vmatpush1.bf16.msra.mxu0 0
      %329 = vmatprep.subr.bf16.mxu0 0
      %330 = vmatpush1.bf16.msra.mxu0 0
      %331 = vmatprep.subr.bf16.mxu0 0
      %332 = vmatpush1.bf16.msra.mxu0 0
      %333 = vmatprep.mubr.bf16.mxu0 0
      %334 = vmatmul.mubr.bf16.gmra.mrb[0].mxu0 %v237
      %v335 = vpop.f32.mrb[0].mxu0
      %v336 = vadd.f32 0.0, %v335
      %v337 = vpop.f32.mrb[0].mxu0
      %v338 = vpop.f32.mrb[0].mxu0
      %v339 = vadd.f32 0.0, %v338
      %v340 = vpop.f32.mrb[0].mxu0
      %341 = vmatprep.mubr.bf16.mxu0 0
      %342 = vmatmul.mubr.bf16.gmra.mrb[0].mxu0 %v238
      %v343 = vpop.f32.mrb[0].mxu0
      %v344 = vadd.f32 0.0, %v343
      %v345 = vpop.f32.mrb[0].mxu0
      %v346 = vpop.f32.mrb[0].mxu0
      %v347 = vadd.f32 0.0, %v346
      %v348 = vpop.f32.mrb[0].mxu0
      %349 = vmatprep.mubr.bf16.mxu0 0
      %350 = vmatmul.mubr.bf16.gmra.mrb[0].mxu0 %v239
      %v351 = vpop.f32.mrb[0].mxu0
      %v352 = vadd.f32 0.0, %v351
      %v353 = vpop.f32.mrb[0].mxu0
      %v354 = vpop.f32.mrb[0].mxu0
      %v355 = vadd.f32 0.0, %v354
      %v356 = vpop.f32.mrb[0].mxu0
      %357 = vmatprep.mubr.bf16.mxu0 0
      %358 = vmatmul.mubr.bf16.gmra.mrb[0].mxu0 %v240
      %v359 = vpop.f32.mrb[0].mxu0
      %v360 = vadd.f32 0.0, %v359
      %v361 = vpop.f32.mrb[0].mxu0
      %v362 = vpop.f32.mrb[0].mxu0
      %v363 = vadd.f32 0.0, %v362
      %v364 = vpop.f32.mrb[0].mxu0
      %365 = vmatprep.mubr.bf16.mxu0 0
      %366 = vmatmul.mubr.bf16.gmra.mrb[0].mxu0 %v241
      %v367 = vpop.f32.mrb[0].mxu0
      %v368 = vadd.f32 0.0, %v367
      %v369 = vpop.f32.mrb[0].mxu0
      %v370 = vpop.f32.mrb[0].mxu0
      %v371 = vadd.f32 0.0, %v370
      %v372 = vpop.f32.mrb[0].mxu0
      %373 = vmatprep.mubr.bf16.mxu0 0
      %374 = vmatmul.mubr.bf16.gmra.mrb[0].mxu0 %v242
      %v375 = vpop.f32.mrb[0].mxu0
      %v376 = vadd.f32 0.0, %v375
      %v377 = vpop.f32.mrb[0].mxu0
      %v378 = vpop.f32.mrb[0].mxu0
      %v379 = vadd.f32 0.0, %v378
      %v380 = vpop.f32.mrb[0].mxu0
      %381 = vmatprep.mubr.bf16.mxu0 0
      %382 = vmatmul.mubr.bf16.gmra.mrb[0].mxu0 %v243
      %v383 = vpop.f32.mrb[0].mxu0
      %v384 = vadd.f32 0.0, %v383
      %v385 = vpop.f32.mrb[0].mxu0
      %v386 = vpop.f32.mrb[0].mxu0
      %v387 = vadd.f32 0.0, %v386
      %v388 = vpop.f32.mrb[0].mxu0
      %389 = vmatprep.mubr.bf16.mxu0 0
      %390 = vmatmul.mubr.bf16.gmra.mrb[0].mxu0 %v244
      %v391 = vpop.f32.mrb[0].mxu0
      %v392 = vadd.f32 0.0, %v391
      %v393 = vpop.f32.mrb[0].mxu0
      %v394 = vpop.f32.mrb[0].mxu0
      %v395 = vadd.f32 0.0, %v394
      %v396 = vpop.f32.mrb[0].mxu0
      %397 = vdwg.mxu0
      %398 = vst [vmem:[%s170] sm:$0xff] %v336
      %399 = vst [vmem:[%s170 + $0x8] sm:$0xff] %v339
      %400 = vst [vmem:[%s170 + $0x10] sm:$0xff] %v344
      %401 = vst [vmem:[%s170 + $0x18] sm:$0xff] %v347
      %402 = vst [vmem:[%s170 + $0x20] sm:$0xff] %v352
      %403 = vst [vmem:[%s170 + $0x28] sm:$0xff] %v355
      %404 = vst [vmem:[%s170 + $0x30] sm:$0xff] %v360
      %405 = vst [vmem:[%s170 + $0x38] sm:$0xff] %v363
      %406 = vst [vmem:[%s170 + $0x40] sm:$0xff] %v368
      %407 = vst [vmem:[%s170 + $0x48] sm:$0xff] %v371
      %408 = vst [vmem:[%s170 + $0x50] sm:$0xff] %v376
      %409 = vst [vmem:[%s170 + $0x58] sm:$0xff] %v379
      %410 = vst [vmem:[%s170 + $0x60] sm:$0xff] %v384
      %411 = vst [vmem:[%s170 + $0x68] sm:$0xff] %v387
      %412 = vst [vmem:[%s170 + $0x70] sm:$0xff] %v392
      %413 = vst [vmem:[%s170 + $0x78] sm:$0xff] %v395
      %p414 = scmp.eq.s32.totalorder %s15, 0
      // Predicated region
      $region29: #{conv_block_forward.2} parent=27 // pred_check
        %p415 = pneg %p414
      $region30: #{conv_block_forward.2} parent=27 // pred_check_branch
        %417 = sbr.rel (%p415) target = $region32
      $region31: #{conv_block_forward.2} parent=27 // pred_region
        %418 = vst [vmem:[%s3] sm:$0x3] 0.0
      $region32: #{conv_block_forward.2} parent=27 // pred_fallthru
        _
      %v419 = vadd.f32 %v336, %v339
      %v420 = vadd.f32 %v419, %v344
      %v421 = vadd.f32 %v420, %v347
      %v422 = vadd.f32 %v421, %v352
      %v423 = vadd.f32 %v422, %v355
      %v424 = vadd.f32 %v423, %v360
      %v425 = vadd.f32 %v424, %v363
      %v426 = vadd.f32 %v425, %v368
      %v427 = vadd.f32 %v426, %v371
      %v428 = vadd.f32 %v427, %v376
      %v429 = vadd.f32 %v428, %v379
      %v430 = vadd.f32 %v429, %v384
      %v431 = vadd.f32 %v430, %v387
      %v432 = vadd.f32 %v431, %v392
      %v433 = vadd.f32 %v432, %v395
      %v434 = vrot.slane %v433, 4
      %v435 = vadd.f32 %v433, %v434
      %v436 = vrot.slane %v435, 2
      %v437 = vadd.f32 %v435, %v436
      %v438 = vrot.slane %v437, 1
      %v439 = vadd.f32 %v437, %v438
      %v440 = vmul.f32 %v336, %v336
      %v441 = vmul.f32 %v339, %v339
      %v442 = vmul.f32 %v344, %v344
      %v443 = vmul.f32 %v347, %v347
      %v444 = vmul.f32 %v352, %v352
      %v445 = vmul.f32 %v355, %v355
      %v446 = vmul.f32 %v360, %v360
      %v447 = vmul.f32 %v363, %v363
      %v448 = vmul.f32 %v368, %v368
      %v449 = vmul.f32 %v371, %v371
      %v450 = vmul.f32 %v376, %v376
      %v451 = vmul.f32 %v379, %v379
      %v452 = vmul.f32 %v384, %v384
      %v453 = vmul.f32 %v387, %v387
      %v454 = vmul.f32 %v392, %v392
      %v455 = vmul.f32 %v395, %v395
      %v456 = vadd.f32 %v440, %v441
      %v457 = vadd.f32 %v456, %v442
      %v458 = vadd.f32 %v457, %v443
      %v459 = vadd.f32 %v458, %v444
      %v460 = vadd.f32 %v459, %v445
      %v461 = vadd.f32 %v460, %v446
      %v462 = vadd.f32 %v461, %v447
      %v463 = vadd.f32 %v462, %v448
      %v464 = vadd.f32 %v463, %v449
      %v465 = vadd.f32 %v464, %v450
      %v466 = vadd.f32 %v465, %v451
      %v467 = vadd.f32 %v466, %v452
      %v468 = vadd.f32 %v467, %v453
      %v469 = vadd.f32 %v468, %v454
      %v470 = vadd.f32 %v469, %v455
      %v471 = vrot.slane %v470, 4
      %v472 = vadd.f32 %v470, %v471
      %v473 = vrot.slane %v472, 2
      %v474 = vadd.f32 %v472, %v473
      %v475 = vrot.slane %v474, 1
      %v476 = vadd.f32 %v474, %v475
      %v477 = vld [vmem:[%s3] sm:$0x3]
      %vm478 = vcmask 1040384
      %v479 = vsel %vm478, %v439, %v476
      %v480 = vadd.f32 %v477, %v479
      %481 = vst [vmem:[%s3] sm:$0x3] %v480
      %s482 = smul.u32 16, %s15
      %p483 = scmp.lt.s32.totalorder %s482, 63
      %s484 = scalar_select %p483, %s482, 63
      %s485 = smul.addr %s484, 8
      %s486 = scalar_lea.vmem %s2, %s485
      // Predicated region
      $region33: #{conv_block_forward.2} parent=27 // pred_check
        %p487 = pneg %p80
      $region34: #{conv_block_forward.2} parent=27 // pred_check_branch
        %489 = sbr.rel (%p487) target = $region36
      $region35: #{conv_block_forward.2} parent=27 // pred_region
        %s490 = smul.u32 16, %s15
      $region36: #{conv_block_forward.2} parent=27 // pred_fallthru
        _
      // Predicated region
      $region37: #{conv_block_forward.2} parent=27 // pred_check
        %p491 = pneg %p101
      $region38: #{conv_block_forward.2} parent=27 // pred_check_branch
        %493 = sbr.rel (%p491) target = $region40
      $region39: #{conv_block_forward.2} parent=27 // pred_region
        _
      $region40: #{conv_block_forward.2} parent=27 // pred_fallthru
        _
      // Predicated region
      $region41: #{conv_block_forward.2} parent=27 // pred_check
        %p494 = pneg %p101
      $region42: #{conv_block_forward.2} parent=27 // pred_check_branch
        %496 = sbr.rel (%p494) target = $region44
      $region43: #{conv_block_forward.2} parent=27 // pred_region
        _
      $region44: #{conv_block_forward.2} parent=27 // pred_fallthru
        _
    $region28: #{conv_block_forward.2} parent=5 // pred_fallthru
      _
    %p497 = scmp.le.s32.totalorder 2, %s10
    // Predicated region
    $region45: #{conv_block_forward.2} parent=5 // pred_check
      %p498 = pneg %p497
    $region46: #{conv_block_forward.2} parent=5 // pred_check_branch
      %500 = sbr.rel (%p498) target = $region48
    $region47: #{conv_block_forward.2} parent=5 // pred_region
      %s501 = ssub.s32 %s10, 2
      // Predicated region
      $region49: #{conv_block_forward.2} parent=47 // pred_check
        %p502 = pneg %p86
      $region50: #{conv_block_forward.2} parent=47 // pred_check_branch
        %504 = sbr.rel (%p502) target = $region52
      $region51: #{conv_block_forward.2} parent=47 // pred_region
        %s505 = smul.u32 16, %s16
        %p506 = scmp.lt.s32.totalorder %s505, 63
        %s507 = scalar_select %p506, %s505, 63
        %s508 = smul.addr %s507, 8
        %s509 = scalar_lea.vmem %s2, %s508
      $region52: #{conv_block_forward.2} parent=47 // pred_fallthru
        _
    $region48: #{conv_block_forward.2} parent=5 // pred_fallthru
      _
  $region6: #{conv_block_forward.2} parent=0 // loop_footer
    %s14 = sadd.s32 1, %s10
  $region7: #{conv_block_forward.2} parent=0 // loop_footer_branch
    %9 = sbr.rel target = $region3
  $region8: #{conv_block_forward.2} parent=0 // loop_exit
    _

</llo_original>
